<compile_context>
chip_gen: v6e
topology: v6e:2x2x1
jax: 0.10.0
libtpu: 0.0.40
codegen_flags: <defaults>
</compile_context>

<pallas_src>
from functools import partial

import jax
import jax.numpy as jnp
from jax.experimental import pallas as pl
from jax.experimental.pallas import tpu as pltpu


def _criterion_kernel(logits_ref, tgt_cls_ref, box_ref, out_ref, *,
                      num_classes, eos_coef, num_queries, num_targets, tile_q):
    """One grid point = one (image b, query-tile qt). Writes partial sums."""
    qt = pl.program_id(1)

    logits = logits_ref[...]                 # (tile_q, K) f32
    tgt = tgt_cls_ref[...]                   # (tile_q, 1) int32 (num_classes = no-object)
    tq, K = logits.shape

    # Row-validity mask for a possibly partial last query tile.
    row = jax.lax.broadcasted_iota(jnp.int32, (tq, 1), 0)
    r_global = qt * tile_q + row             # query index within this image
    valid = r_global < num_queries
    logits = jnp.where(valid, logits, 0.0)   # keep padding rows finite

    # ---------------- weighted cross entropy partials (loss_ce) ----------------
    k_iota = jax.lax.broadcasted_iota(jnp.int32, (tq, K), 1)
    one_hot = k_iota == tgt

    m = jnp.max(logits, axis=-1, keepdims=True)
    lse = m + jnp.log(jnp.sum(jnp.exp(logits - m), axis=-1, keepdims=True))
    logit_t = jnp.sum(jnp.where(one_hot, logits, 0.0), axis=-1, keepdims=True)
    nll = lse - logit_t                      # (tq, 1)

    # empty_weight == ones(K) with last entry = eos_coef
    w = jnp.where(valid,
                  jnp.where(tgt == num_classes, jnp.float32(eos_coef), jnp.float32(1.0)),
                  jnp.float32(0.0))
    sum_wnll = jnp.sum(w * nll)
    sum_w = jnp.sum(w)

    # ---------------- class error partial (top-1 over matched queries) ---------
    matched = valid & (r_global < num_targets)
    # TODO(synk): 'logit_at_tgt >= max' is an argmax proxy; only diverges from
    # torch.argmax on exact logit ties (measure-zero for float activations).
    tgt_is_max = logit_t >= m
    correct = jnp.sum(jnp.where(matched & tgt_is_max, 1.0, 0.0))

    # ---------------- cardinality partial (per-image via grid axis 0) ----------
    noobj_is_max = logits[:, K - 1:K] >= m
    card = jnp.sum(jnp.where(valid & jnp.logical_not(noobj_is_max), 1.0, 0.0))

    # ---------------- boxes: L1 + GIoU sums (lane-dense (8, N_pad) layout) -----
    # Tiny elementwise work on (1, N_pad) vectors; computed every tile (identical
    # values), the wrapper reads the [0, 0] copy only. Padded columns hold identical
    # non-degenerate boxes on both sides -> contribute exactly 0.
    bx = box_ref[...]                        # (8, N_pad)
    l1_sum = jnp.sum(jnp.abs(bx[0:4, :] - bx[4:8, :]))

    s_cx, s_cy, s_w, s_h = bx[0:1, :], bx[1:2, :], bx[2:3, :], bx[3:4, :]
    t_cx, t_cy, t_w, t_h = bx[4:5, :], bx[5:6, :], bx[6:7, :], bx[7:8, :]
    sx0, sy0 = s_cx - 0.5 * s_w, s_cy - 0.5 * s_h
    sx1, sy1 = s_cx + 0.5 * s_w, s_cy + 0.5 * s_h
    tx0, ty0 = t_cx - 0.5 * t_w, t_cy - 0.5 * t_h
    tx1, ty1 = t_cx + 0.5 * t_w, t_cy + 0.5 * t_h
    area_s = (sx1 - sx0) * (sy1 - sy0)
    area_t = (tx1 - tx0) * (ty1 - ty0)
    iw = jnp.maximum(jnp.minimum(sx1, tx1) - jnp.maximum(sx0, tx0), 0.0)
    ih = jnp.maximum(jnp.minimum(sy1, ty1) - jnp.maximum(sy0, ty0), 0.0)
    inter = iw * ih
    union = area_s + area_t - inter
    # TODO(synk): no epsilon in IoU/GIoU divisions, matching torchvision box_ops /
    # the reference; degenerate zero-area boxes would produce NaN/Inf.
    iou = inter / union
    cw = jnp.maximum(jnp.maximum(sx1, tx1) - jnp.minimum(sx0, tx0), 0.0)
    ch = jnp.maximum(jnp.maximum(sy1, ty1) - jnp.minimum(sy0, ty0), 0.0)
    area_c = cw * ch
    giou = iou - (area_c - union) / area_c
    giou_sum = jnp.sum(1.0 - giou)

    # ---------------- pack partial sums into a lane-dense (8,128) block --------
    lane = jax.lax.broadcasted_iota(jnp.int32, (1, 128), 1)
    rowv = jnp.zeros((1, 128), jnp.float32)
    rowv = jnp.where(lane == 0, sum_wnll, rowv)
    rowv = jnp.where(lane == 1, sum_w, rowv)
    rowv = jnp.where(lane == 2, correct, rowv)
    rowv = jnp.where(lane == 3, card, rowv)
    rowv = jnp.where(lane == 4, l1_sum, rowv)
    rowv = jnp.where(lane == 5, giou_sum, rowv)
    out_ref[...] = jnp.broadcast_to(rowv, (8, 128))


class SetCriterionPallas:
    """Pallas port of SetCriterion with losses = ['labels', 'cardinality', 'boxes']."""

    def __init__(self, num_classes, eos_coef=0.1):
        self.num_classes = num_classes
        self.eos_coef = float(eos_coef)
        # deterministic buffer (same as register_buffer('empty_weight', ...))
        self.empty_weight = jnp.ones((num_classes + 1,), jnp.float32).at[-1].set(eos_coef)

    def forward(self, outputs, targets):
        pred_logits = outputs['pred_logits']   # (B,Q,K) f32
        pred_boxes = outputs['pred_boxes']     # (B,Q,4) f32
        labels = targets['labels']             # (B,T) int32
        cthw = targets['cthw']                 # (B,T,4) f32
        B, Q, K = pred_logits.shape
        T = labels.shape[1]

        # --- glue: identity matching -> dense target-class map ------------------
        q = jnp.arange(Q)[None, :]
        labels_pad = jnp.pad(labels, ((0, 0), (0, Q - T)),
                             constant_values=self.num_classes)
        target_classes = jnp.where(q < T, labels_pad, self.num_classes)
        target_classes = target_classes.astype(jnp.int32)[:, :, None]          # (B,Q,1)

        # --- lane-dense box repack: rows = [scx,scy,sw,sh,tcx,tcy,tw,th] --------
        N = B * T
        N_pad = max(128, -(-N // 128) * 128)
        src_t = pred_boxes[:, :T, :].reshape(N, 4).T                            # (4,N)
        tgt_t = cthw.reshape(N, 4).T                                            # (4,N)
        boxes8 = jnp.concatenate([src_t, tgt_t], axis=0)                        # (8,N)
        # pad columns with identical non-degenerate boxes -> zero L1/GIoU contribution
        boxes8 = jnp.pad(boxes8, ((0, 0), (0, N_pad - N)), constant_values=0.5)

        # --- query tiling: biggest (8,128)-legal tile up to 512 rows -------------
        if Q % 8 == 0:
            tile_q = min(512, Q)
        else:
            tile_q = Q                     # full query dim (legal block shape)
        n_qt = -(-Q // tile_q)

        kernel = partial(_criterion_kernel,
                         num_classes=self.num_classes,
                         eos_coef=self.eos_coef,
                         num_queries=Q,
                         num_targets=T,
                         tile_q=tile_q)

        cost = pl.CostEstimate(
            flops=12 * B * Q * K,
            transcendentals=B * Q * K,
            bytes_accessed=4 * B * Q * K + 4 * B * Q + 4 * 8 * N_pad
                           + 4 * B * n_qt * 8 * 128)

        partials = pl.pallas_call(
            kernel,
            out_shape=jax.ShapeDtypeStruct((B, n_qt, 8, 128), jnp.float32),
            grid=(B, n_qt),
            in_specs=[
                pl.BlockSpec((None, tile_q, K), lambda b, t: (b, t, 0)),
                pl.BlockSpec((None, tile_q, 1), lambda b, t: (b, t, 0)),
                pl.BlockSpec((8, N_pad), lambda b, t: (0, 0)),
            ],
            out_specs=pl.BlockSpec((None, None, 8, 128), lambda b, t: (b, t, 0, 0)),
            compiler_params=pltpu.CompilerParams(
                dimension_semantics=("parallel", "parallel"),
                vmem_limit_bytes=32 * 1024 * 1024),
            cost_estimate=cost,
        )(pred_logits, target_classes, boxes8)

        # --- finalize (tiny reductions / divisions) in the wrapper ---------------
        p = partials[:, :, 0, :]                                   # (B, n_qt, 128)
        num_boxes = max(float(N), 1.0)

        loss_ce = jnp.sum(p[..., 0]) / jnp.sum(p[..., 1])
        class_error = 100.0 - 100.0 * jnp.sum(p[..., 2]) / float(B * T)
        card_pred = jnp.sum(p[..., 3], axis=1)                     # (B,)
        card_err = jnp.mean(jnp.abs(card_pred - float(T)))
        loss_bbox = p[0, 0, 4] / num_boxes
        loss_giou = p[0, 0, 5] / num_boxes

        return {
            'loss_ce': loss_ce,
            'class_error': class_error,
            'cardinality_error': card_err,
            'loss_bbox': loss_bbox,
            'loss_giou': loss_giou,
        }


def _reference(pred_logits, pred_boxes, labels, cthw, num_classes, eos_coef):
    """Pure-JAX reference mirroring the PyTorch semantics (identity matching)."""
    B, Q, K = pred_logits.shape
    T = labels.shape[1]
    q = jnp.arange(Q)[None, :]
    labels_pad = jnp.pad(labels, ((0, 0), (0, Q - T)), constant_values=num_classes)
    target_classes = jnp.where(q < T, labels_pad, num_classes)

    logp = jax.nn.log_softmax(pred_logits, axis=-1)
    nll = -jnp.take_along_axis(logp, target_classes[..., None], axis=-1)[..., 0]
    w = jnp.where(target_classes == num_classes, eos_coef, 1.0)
    loss_ce = jnp.sum(w * nll) / jnp.sum(w)

    pred_cls = jnp.argmax(pred_logits, axis=-1)
    correct = (pred_cls == target_classes) & (q < T)
    class_error = 100.0 - 100.0 * jnp.sum(correct) / float(B * T)

    card_pred = jnp.sum(pred_cls != K - 1, axis=1).astype(jnp.float32)
    card_err = jnp.mean(jnp.abs(card_pred - float(T)))

    num_boxes = max(float(B * T), 1.0)
    sb = pred_boxes[:, :T, :].reshape(-1, 4)
    tb = cthw.reshape(-1, 4)
    loss_bbox = jnp.sum(jnp.abs(sb - tb)) / num_boxes

    def xyxy(b):
        return jnp.concatenate([b[:, :2] - 0.5 * b[:, 2:], b[:, :2] + 0.5 * b[:, 2:]], -1)

    s, t = xyxy(sb), xyxy(tb)
    area_s = (s[:, 2] - s[:, 0]) * (s[:, 3] - s[:, 1])
    area_t = (t[:, 2] - t[:, 0]) * (t[:, 3] - t[:, 1])
    lt = jnp.maximum(s[:, :2], t[:, :2])
    rb = jnp.minimum(s[:, 2:], t[:, 2:])
    wh = jnp.clip(rb - lt, 0.0)
    inter = wh[:, 0] * wh[:, 1]
    union = area_s + area_t - inter
    iou = inter / union
    ltc = jnp.minimum(s[:, :2], t[:, :2])
    rbc = jnp.maximum(s[:, 2:], t[:, 2:])
    whc = jnp.clip(rbc - ltc, 0.0)
    areac = whc[:, 0] * whc[:, 1]
    giou = iou - (areac - union) / areac
    loss_giou = jnp.sum(1.0 - giou) / num_boxes

    return {'loss_ce': loss_ce, 'class_error': class_error,
            'cardinality_error': card_err, 'loss_bbox': loss_bbox,
            'loss_giou': loss_giou}


if __name__ == "__main__":
    B, Q, T = 2, 8, 4
    num_classes = 31          # K = num_classes + 1 = 32 logits
    K = num_classes + 1
    eos_coef = 0.1

    key = jax.random.PRNGKey(0)
    k1, k2, k3, k4, k5, k6 = jax.random.split(key, 6)

    pred_logits = jax.random.normal(k1, (B, Q, K), jnp.float32)
    pred_boxes = jnp.concatenate(
        [jax.random.uniform(k2, (B, Q, 2), minval=0.3, maxval=0.7),
         jax.random.uniform(k3, (B, Q, 2), minval=0.1, maxval=0.3)], axis=-1)
    labels = jax.random.randint(k4, (B, T), 0, num_classes).astype(jnp.int32)
    tgt_cthw = jnp.concatenate(
        [jax.random.uniform(k5, (B, T, 2), minval=0.3, maxval=0.7),
         jax.random.uniform(k6, (B, T, 2), minval=0.1, maxval=0.3)], axis=-1)

    crit = SetCriterionPallas(num_classes=num_classes, eos_coef=eos_coef)
    losses = crit.forward({'pred_logits': pred_logits, 'pred_boxes': pred_boxes},
                          {'labels': labels, 'cthw': tgt_cthw})
    losses = {k: jax.block_until_ready(v) for k, v in losses.items()}

    ref = _reference(pred_logits, pred_boxes, labels, tgt_cthw, num_classes, eos_coef)
    for name in losses:
        got, want = float(losses[name]), float(ref[name])
        assert jnp.isfinite(losses[name]), name
        assert abs(got - want) < 1e-3, (name, got, want)

    print("KERNEL_OK")
</pallas_src>

<mosaic_0001>
module attributes {stable_mosaic.version = 11 : i64} {
  func.func @_criterion_kernel(%arg0: i32, %arg1: i32, %arg2: memref<1x8x32xf32, #tpu.memory_space<vmem>>, %arg3: memref<1x8x1xi32, #tpu.memory_space<vmem>>, %arg4: memref<8x128xf32, #tpu.memory_space<vmem>>, %arg5: memref<1x1x8x128xf32, #tpu.memory_space<vmem>>) attributes {dimension_semantics = [#tpu.dimension_semantics<parallel>, #tpu.dimension_semantics<parallel>], iteration_bounds = array<i64: 2, 1>, scalar_prefetch = 0 : i64, scratch_operands = 0 : i64, tpu.core_type = #tpu.core_type<tc>, window_params = [{transform_indices = @transform_0, window_bounds = array<i64: 1, 8, 32>}, {transform_indices = @transform_1, window_bounds = array<i64: 1, 8, 1>}, {pipeline_mode = #tpu.pipeline_mode<synchronous>, transform_indices = @transform_2, window_bounds = array<i64: 8, 128>}, {transform_indices = @transform_3, window_bounds = array<i64: 1, 1, 8, 128>}]} {
    %c0 = arith.constant 0 : index
    %c0_0 = arith.constant 0 : index
    %c0_1 = arith.constant 0 : index
    %0 = vector.load %arg2[%c0, %c0_0, %c0_1] : memref<1x8x32xf32, #tpu.memory_space<vmem>>, vector<1x8x32xf32>
    %1 = vector.shape_cast %0 : vector<1x8x32xf32> to vector<8x32xf32>
    %c0_2 = arith.constant 0 : index
    %c0_3 = arith.constant 0 : index
    %c0_4 = arith.constant 0 : index
    %2 = vector.load %arg3[%c0_2, %c0_3, %c0_4] : memref<1x8x1xi32, #tpu.memory_space<vmem>>, vector<1x8x1xi32>
    %3 = vector.shape_cast %2 : vector<1x8x1xi32> to vector<8x1xi32>
    %4 = tpu.iota {dimensions = array<i32: 0>} : vector<8x1xi32>
    %c8_i32 = arith.constant 8 : i32
    %5 = arith.muli %arg1, %c8_i32 : i32
    %6 = vector.broadcast %5 : i32 to vector<8x1xi32>
    %7 = arith.addi %6, %4 : vector<8x1xi32>
    %c8_i32_5 = arith.constant 8 : i32
    %8 = vector.broadcast %c8_i32_5 : i32 to vector<8x1xi32>
    %9 = arith.cmpi slt, %7, %8 : vector<8x1xi32>
    %cst = arith.constant 0.000000e+00 : f32
    %10 = vector.shape_cast %9 : vector<8x1xi1> to vector<8x1xi1>
    %11 = vector.broadcast %10 : vector<8x1xi1> to vector<8x32xi1>
    %12 = vector.broadcast %cst : f32 to vector<8x32xf32>
    %13 = arith.select %11, %1, %12 : vector<8x32xi1>, vector<8x32xf32>
    %14 = tpu.iota {dimensions = array<i32: 1>} : vector<8x32xi32>
    %15 = vector.broadcast %3 : vector<8x1xi32> to vector<8x32xi32>
    %16 = arith.cmpi eq, %14, %15 : vector<8x32xi32>
    %cst_6 = arith.constant dense<0xFF800000> : vector<8xf32>
    %17 = vector.multi_reduction <maximumf>, %13, %cst_6 [1] : vector<8x32xf32> to vector<8xf32>
    %18 = vector.shape_cast %17 : vector<8xf32> to vector<8x1xf32>
    %19 = vector.broadcast %18 : vector<8x1xf32> to vector<8x32xf32>
    %20 = arith.subf %13, %19 : vector<8x32xf32>
    %21 = math.exp %20 : vector<8x32xf32>
    %cst_7 = arith.constant dense<0.000000e+00> : vector<8xf32>
    %22 = vector.multi_reduction <add>, %21, %cst_7 [1] : vector<8x32xf32> to vector<8xf32>
    %23 = vector.shape_cast %22 : vector<8xf32> to vector<8x1xf32>
    %24 = math.log %23 : vector<8x1xf32>
    %25 = arith.addf %18, %24 : vector<8x1xf32>
    %cst_8 = arith.constant 0.000000e+00 : f32
    %26 = vector.broadcast %cst_8 : f32 to vector<8x32xf32>
    %27 = arith.select %16, %13, %26 : vector<8x32xi1>, vector<8x32xf32>
    %cst_9 = arith.constant dense<0.000000e+00> : vector<8xf32>
    %28 = vector.multi_reduction <add>, %27, %cst_9 [1] : vector<8x32xf32> to vector<8xf32>
    %29 = vector.shape_cast %28 : vector<8xf32> to vector<8x1xf32>
    %30 = arith.subf %25, %29 : vector<8x1xf32>
    %c31_i32 = arith.constant 31 : i32
    %31 = vector.broadcast %c31_i32 : i32 to vector<8x1xi32>
    %32 = arith.cmpi eq, %3, %31 : vector<8x1xi32>
    %cst_10 = arith.constant 1.000000e-01 : f32
    %cst_11 = arith.constant 1.000000e+00 : f32
    %33 = vector.broadcast %cst_10 : f32 to vector<8x1xf32>
    %34 = vector.broadcast %cst_11 : f32 to vector<8x1xf32>
    %35 = arith.select %32, %33, %34 : vector<8x1xi1>, vector<8x1xf32>
    %cst_12 = arith.constant 0.000000e+00 : f32
    %36 = vector.broadcast %cst_12 : f32 to vector<8x1xf32>
    %37 = arith.select %9, %35, %36 : vector<8x1xi1>, vector<8x1xf32>
    %38 = arith.mulf %37, %30 : vector<8x1xf32>
    %39 = vector.shape_cast %38 : vector<8x1xf32> to vector<1x8x1xf32>
    %cst_13 = arith.constant dense<0.000000e+00> : vector<1xf32>
    %40 = vector.multi_reduction <add>, %39, %cst_13 [1, 2] : vector<1x8x1xf32> to vector<1xf32>
    %41 = vector.shape_cast %40 : vector<1xf32> to vector<1x1x1xf32>
    %42 = vector.extract %41[0, 0, 0] : f32 from vector<1x1x1xf32>
    %43 = vector.shape_cast %37 : vector<8x1xf32> to vector<1x8x1xf32>
    %cst_14 = arith.constant dense<0.000000e+00> : vector<1xf32>
    %44 = vector.multi_reduction <add>, %43, %cst_14 [1, 2] : vector<1x8x1xf32> to vector<1xf32>
    %45 = vector.shape_cast %44 : vector<1xf32> to vector<1x1x1xf32>
    %46 = vector.extract %45[0, 0, 0] : f32 from vector<1x1x1xf32>
    %c4_i32 = arith.constant 4 : i32
    %47 = vector.broadcast %c4_i32 : i32 to vector<8x1xi32>
    %48 = arith.cmpi slt, %7, %47 : vector<8x1xi32>
    %49 = arith.andi %9, %48 : vector<8x1xi1>
    %50 = arith.cmpf oge, %29, %18 : vector<8x1xf32>
    %51 = arith.andi %49, %50 : vector<8x1xi1>
    %cst_15 = arith.constant 1.000000e+00 : f32
    %cst_16 = arith.constant 0.000000e+00 : f32
    %52 = vector.broadcast %cst_15 : f32 to vector<8x1xf32>
    %53 = vector.broadcast %cst_16 : f32 to vector<8x1xf32>
    %54 = arith.select %51, %52, %53 : vector<8x1xi1>, vector<8x1xf32>
    %55 = vector.shape_cast %54 : vector<8x1xf32> to vector<1x8x1xf32>
    %cst_17 = arith.constant dense<0.000000e+00> : vector<1xf32>
    %56 = vector.multi_reduction <add>, %55, %cst_17 [1, 2] : vector<1x8x1xf32> to vector<1xf32>
    %57 = vector.shape_cast %56 : vector<1xf32> to vector<1x1x1xf32>
    %58 = vector.extract %57[0, 0, 0] : f32 from vector<1x1x1xf32>
    %59 = vector.extract_strided_slice %13 {offsets = [0, 31], sizes = [8, 1], strides = [1, 1]} : vector<8x32xf32> to vector<8x1xf32>
    %60 = arith.cmpf oge, %59, %18 : vector<8x1xf32>
    %cst_18 = arith.constant dense<true> : vector<8x1xi1>
    %61 = arith.xori %60, %cst_18 : vector<8x1xi1>
    %62 = arith.andi %9, %61 : vector<8x1xi1>
    %cst_19 = arith.constant 1.000000e+00 : f32
    %cst_20 = arith.constant 0.000000e+00 : f32
    %63 = vector.broadcast %cst_19 : f32 to vector<8x1xf32>
    %64 = vector.broadcast %cst_20 : f32 to vector<8x1xf32>
    %65 = arith.select %62, %63, %64 : vector<8x1xi1>, vector<8x1xf32>
    %66 = vector.shape_cast %65 : vector<8x1xf32> to vector<1x8x1xf32>
    %cst_21 = arith.constant dense<0.000000e+00> : vector<1xf32>
    %67 = vector.multi_reduction <add>, %66, %cst_21 [1, 2] : vector<1x8x1xf32> to vector<1xf32>
    %68 = vector.shape_cast %67 : vector<1xf32> to vector<1x1x1xf32>
    %69 = vector.extract %68[0, 0, 0] : f32 from vector<1x1x1xf32>
    %c0_22 = arith.constant 0 : index
    %c0_23 = arith.constant 0 : index
    %70 = vector.load %arg4[%c0_22, %c0_23] : memref<8x128xf32, #tpu.memory_space<vmem>>, vector<8x128xf32>
    %71 = vector.extract_strided_slice %70 {offsets = [0, 0], sizes = [4, 128], strides = [1, 1]} : vector<8x128xf32> to vector<4x128xf32>
    %72 = vector.extract_strided_slice %70 {offsets = [4, 0], sizes = [4, 128], strides = [1, 1]} : vector<8x128xf32> to vector<4x128xf32>
    %73 = arith.subf %71, %72 : vector<4x128xf32>
    %74 = math.absf %73 : vector<4x128xf32>
    %75 = vector.shape_cast %74 : vector<4x128xf32> to vector<1x4x128xf32>
    %cst_24 = arith.constant dense<0.000000e+00> : vector<1xf32>
    %76 = vector.multi_reduction <add>, %75, %cst_24 [1, 2] : vector<1x4x128xf32> to vector<1xf32>
    %77 = vector.shape_cast %76 : vector<1xf32> to vector<1x1x1xf32>
    %78 = vector.extract %77[0, 0, 0] : f32 from vector<1x1x1xf32>
    %79 = vector.extract_strided_slice %70 {offsets = [0, 0], sizes = [1, 128], strides = [1, 1]} : vector<8x128xf32> to vector<1x128xf32>
    %80 = vector.extract_strided_slice %70 {offsets = [1, 0], sizes = [1, 128], strides = [1, 1]} : vector<8x128xf32> to vector<1x128xf32>
    %81 = vector.extract_strided_slice %70 {offsets = [2, 0], sizes = [1, 128], strides = [1, 1]} : vector<8x128xf32> to vector<1x128xf32>
    %82 = vector.extract_strided_slice %70 {offsets = [3, 0], sizes = [1, 128], strides = [1, 1]} : vector<8x128xf32> to vector<1x128xf32>
    %83 = vector.extract_strided_slice %70 {offsets = [4, 0], sizes = [1, 128], strides = [1, 1]} : vector<8x128xf32> to vector<1x128xf32>
    %84 = vector.extract_strided_slice %70 {offsets = [5, 0], sizes = [1, 128], strides = [1, 1]} : vector<8x128xf32> to vector<1x128xf32>
    %85 = vector.extract_strided_slice %70 {offsets = [6, 0], sizes = [1, 128], strides = [1, 1]} : vector<8x128xf32> to vector<1x128xf32>
    %86 = vector.extract_strided_slice %70 {offsets = [7, 0], sizes = [1, 128], strides = [1, 1]} : vector<8x128xf32> to vector<1x128xf32>
    %cst_25 = arith.constant 5.000000e-01 : f32
    %87 = vector.broadcast %cst_25 : f32 to vector<1x128xf32>
    %88 = arith.mulf %87, %81 : vector<1x128xf32>
    %89 = arith.subf %79, %88 : vector<1x128xf32>
    %cst_26 = arith.constant 5.000000e-01 : f32
    %90 = vector.broadcast %cst_26 : f32 to vector<1x128xf32>
    %91 = arith.mulf %90, %82 : vector<1x128xf32>
    %92 = arith.subf %80, %91 : vector<1x128xf32>
    %cst_27 = arith.constant 5.000000e-01 : f32
    %93 = vector.broadcast %cst_27 : f32 to vector<1x128xf32>
    %94 = arith.mulf %93, %81 : vector<1x128xf32>
    %95 = arith.addf %79, %94 : vector<1x128xf32>
    %cst_28 = arith.constant 5.000000e-01 : f32
    %96 = vector.broadcast %cst_28 : f32 to vector<1x128xf32>
    %97 = arith.mulf %96, %82 : vector<1x128xf32>
    %98 = arith.addf %80, %97 : vector<1x128xf32>
    %cst_29 = arith.constant 5.000000e-01 : f32
    %99 = vector.broadcast %cst_29 : f32 to vector<1x128xf32>
    %100 = arith.mulf %99, %85 : vector<1x128xf32>
    %101 = arith.subf %83, %100 : vector<1x128xf32>
    %cst_30 = arith.constant 5.000000e-01 : f32
    %102 = vector.broadcast %cst_30 : f32 to vector<1x128xf32>
    %103 = arith.mulf %102, %86 : vector<1x128xf32>
    %104 = arith.subf %84, %103 : vector<1x128xf32>
    %cst_31 = arith.constant 5.000000e-01 : f32
    %105 = vector.broadcast %cst_31 : f32 to vector<1x128xf32>
    %106 = arith.mulf %105, %85 : vector<1x128xf32>
    %107 = arith.addf %83, %106 : vector<1x128xf32>
    %cst_32 = arith.constant 5.000000e-01 : f32
    %108 = vector.broadcast %cst_32 : f32 to vector<1x128xf32>
    %109 = arith.mulf %108, %86 : vector<1x128xf32>
    %110 = arith.addf %84, %109 : vector<1x128xf32>
    %111 = arith.subf %95, %89 : vector<1x128xf32>
    %112 = arith.subf %98, %92 : vector<1x128xf32>
    %113 = arith.mulf %111, %112 : vector<1x128xf32>
    %114 = arith.subf %107, %101 : vector<1x128xf32>
    %115 = arith.subf %110, %104 : vector<1x128xf32>
    %116 = arith.mulf %114, %115 : vector<1x128xf32>
    %117 = arith.minimumf %95, %107 : vector<1x128xf32>
    %118 = arith.maximumf %89, %101 : vector<1x128xf32>
    %119 = arith.subf %117, %118 : vector<1x128xf32>
    %cst_33 = arith.constant 0.000000e+00 : f32
    %120 = vector.broadcast %cst_33 : f32 to vector<1x128xf32>
    %121 = arith.maximumf %119, %120 : vector<1x128xf32>
    %122 = arith.minimumf %98, %110 : vector<1x128xf32>
    %123 = arith.maximumf %92, %104 : vector<1x128xf32>
    %124 = arith.subf %122, %123 : vector<1x128xf32>
    %cst_34 = arith.constant 0.000000e+00 : f32
    %125 = vector.broadcast %cst_34 : f32 to vector<1x128xf32>
    %126 = arith.maximumf %124, %125 : vector<1x128xf32>
    %127 = arith.mulf %121, %126 : vector<1x128xf32>
    %128 = arith.addf %113, %116 : vector<1x128xf32>
    %129 = arith.subf %128, %127 : vector<1x128xf32>
    %130 = arith.divf %127, %129 : vector<1x128xf32>
    %131 = arith.maximumf %95, %107 : vector<1x128xf32>
    %132 = arith.minimumf %89, %101 : vector<1x128xf32>
    %133 = arith.subf %131, %132 : vector<1x128xf32>
    %cst_35 = arith.constant 0.000000e+00 : f32
    %134 = vector.broadcast %cst_35 : f32 to vector<1x128xf32>
    %135 = arith.maximumf %133, %134 : vector<1x128xf32>
    %136 = arith.maximumf %98, %110 : vector<1x128xf32>
    %137 = arith.minimumf %92, %104 : vector<1x128xf32>
    %138 = arith.subf %136, %137 : vector<1x128xf32>
    %cst_36 = arith.constant 0.000000e+00 : f32
    %139 = vector.broadcast %cst_36 : f32 to vector<1x128xf32>
    %140 = arith.maximumf %138, %139 : vector<1x128xf32>
    %141 = arith.mulf %135, %140 : vector<1x128xf32>
    %142 = arith.subf %141, %129 : vector<1x128xf32>
    %143 = arith.divf %142, %141 : vector<1x128xf32>
    %144 = arith.subf %130, %143 : vector<1x128xf32>
    %cst_37 = arith.constant 1.000000e+00 : f32
    %145 = vector.broadcast %cst_37 : f32 to vector<1x128xf32>
    %146 = arith.subf %145, %144 : vector<1x128xf32>
    %147 = vector.shape_cast %146 : vector<1x128xf32> to vector<1x1x128xf32>
    %cst_38 = arith.constant dense<0.000000e+00> : vector<1xf32>
    %148 = vector.multi_reduction <add>, %147, %cst_38 [1, 2] : vector<1x1x128xf32> to vector<1xf32>
    %149 = vector.shape_cast %148 : vector<1xf32> to vector<1x1x1xf32>
    %150 = vector.extract %149[0, 0, 0] : f32 from vector<1x1x1xf32>
    %151 = tpu.iota {dimensions = array<i32: 1>} : vector<1x128xi32>
    %cst_39 = arith.constant 0.000000e+00 : f32
    %152 = vector.broadcast %cst_39 : f32 to vector<1x128xf32>
    %c0_i32 = arith.constant 0 : i32
    %153 = vector.broadcast %c0_i32 : i32 to vector<1x128xi32>
    %154 = arith.cmpi eq, %151, %153 : vector<1x128xi32>
    %155 = vector.broadcast %42 : f32 to vector<1x128xf32>
    %156 = arith.select %154, %155, %152 : vector<1x128xi1>, vector<1x128xf32>
    %c1_i32 = arith.constant 1 : i32
    %157 = vector.broadcast %c1_i32 : i32 to vector<1x128xi32>
    %158 = arith.cmpi eq, %151, %157 : vector<1x128xi32>
    %159 = vector.broadcast %46 : f32 to vector<1x128xf32>
    %160 = arith.select %158, %159, %156 : vector<1x128xi1>, vector<1x128xf32>
    %c2_i32 = arith.constant 2 : i32
    %161 = vector.broadcast %c2_i32 : i32 to vector<1x128xi32>
    %162 = arith.cmpi eq, %151, %161 : vector<1x128xi32>
    %163 = vector.broadcast %58 : f32 to vector<1x128xf32>
    %164 = arith.select %162, %163, %160 : vector<1x128xi1>, vector<1x128xf32>
    %c3_i32 = arith.constant 3 : i32
    %165 = vector.broadcast %c3_i32 : i32 to vector<1x128xi32>
    %166 = arith.cmpi eq, %151, %165 : vector<1x128xi32>
    %167 = vector.broadcast %69 : f32 to vector<1x128xf32>
    %168 = arith.select %166, %167, %164 : vector<1x128xi1>, vector<1x128xf32>
    %c4_i32_40 = arith.constant 4 : i32
    %169 = vector.broadcast %c4_i32_40 : i32 to vector<1x128xi32>
    %170 = arith.cmpi eq, %151, %169 : vector<1x128xi32>
    %171 = vector.broadcast %78 : f32 to vector<1x128xf32>
    %172 = arith.select %170, %171, %168 : vector<1x128xi1>, vector<1x128xf32>
    %c5_i32 = arith.constant 5 : i32
    %173 = vector.broadcast %c5_i32 : i32 to vector<1x128xi32>
    %174 = arith.cmpi eq, %151, %173 : vector<1x128xi32>
    %175 = vector.broadcast %150 : f32 to vector<1x128xf32>
    %176 = arith.select %174, %175, %172 : vector<1x128xi1>, vector<1x128xf32>
    %177 = vector.shape_cast %176 : vector<1x128xf32> to vector<1x128xf32>
    %178 = vector.broadcast %177 : vector<1x128xf32> to vector<8x128xf32>
    %c0_41 = arith.constant 0 : index
    %c0_42 = arith.constant 0 : index
    %c0_43 = arith.constant 0 : index
    %c0_44 = arith.constant 0 : index
    %179 = vector.load %arg5[%c0_41, %c0_42, %c0_43, %c0_44] : memref<1x1x8x128xf32, #tpu.memory_space<vmem>>, vector<1x1x8x128xf32>
    %180 = vector.shape_cast %179 : vector<1x1x8x128xf32> to vector<8x128xf32>
    %181 = vector.shape_cast %178 : vector<8x128xf32> to vector<1x1x8x128xf32>
    tpu.vector_store %arg5[%c0_41, %c0_42, %c0_43, %c0_44], %181 {strides = array<i32>} : memref<1x1x8x128xf32, #tpu.memory_space<vmem>>, vector<1x1x8x128xf32>,
    return
  }
  func.func @transform_0(%arg0: i32, %arg1: i32) -> (i32, i32, i32) {
    %c0_i32 = arith.constant 0 : i32
    %c0_i32_0 = arith.constant 0 : i32
    return %arg0, %arg1, %c0_i32 : i32, i32, i32
  }
  func.func @transform_1(%arg0: i32, %arg1: i32) -> (i32, i32, i32) {
    %c0_i32 = arith.constant 0 : i32
    %c0_i32_0 = arith.constant 0 : i32
    return %arg0, %arg1, %c0_i32 : i32, i32, i32
  }
  func.func @transform_2(%arg0: i32, %arg1: i32) -> (i32, i32) {
    %c0_i32 = arith.constant 0 : i32
    %c0_i32_0 = arith.constant 0 : i32
    %c0_i32_1 = arith.constant 0 : i32
    return %c0_i32, %c0_i32_0 : i32, i32
  }
  func.func @transform_3(%arg0: i32, %arg1: i32) -> (i32, i32, i32, i32) {
    %c0_i32 = arith.constant 0 : i32
    %c0_i32_0 = arith.constant 0 : i32
    %c0_i32_1 = arith.constant 0 : i32
    return %arg0, %arg1, %c0_i32, %c0_i32_0 : i32, i32, i32, i32
  }
}

</mosaic_0001>

<llo_original>
// kernel: tpu_custom_call.1
$region0: #{tpu_custom_call.1}
  #allocation0 [shape = 'u32[]', space=smem, size = 0x4, offset = 0x4, fixed_abs, tag = 'smem constant byte address 0x4 - core index']
  #allocation1 [shape = 'u32[144,128]{1,0:T(1,128)}', space=vmem, size = 0x12000, scoped, tag = 'internal scratch']
  %s0 = inlined_call_operand.vmem [shape: f32[2,8,32], index: 0, kind: input, shape index: {}]
  %s1 = inlined_call_operand.vmem [shape: s32[2,8,1], index: 1, kind: input, shape index: {}]
  %s2 = inlined_call_operand.hbm [shape: f32[8,128], index: 2, kind: input, shape index: {}]
  %s3 = inlined_call_operand.hbm [shape: f32[2,1,8,128], index: 3, kind: output, shape index: {}]
  %s4 = sld [smem:[#allocation0]]
  $region49: #{tpu_custom_call.1} parent=0
    _
  %s6 = ssub.s32 1, %s4
  %s7 = scalar_select 0, %s6, %s4
  $region1: #{tpu_custom_call.1} parent=0
    #allocation2 [shape = 'u8[4096]{0}', space=vmem, size = 0x1000, scoped, tag = 'input window, operand 2, single buffered']
    #allocation3 [shape = 's32[2]{0}', space=sflag, size = 0x8, scoped, tag = 'scoped memory for tpu_custom_call.1']
    #allocation4 [shape = 's32[2]{0}', space=sflag, size = 0x8, scoped, tag = 'scoped memory for tpu_custom_call.1']
    #allocation5 [shape = 'u8[8192]{0}', space=vmem, size = 0x2000, scoped, tag = 'output window, operand 0']
    %8 = vsyncpa [#allocation3], 0
    %9 = vsyncpa [#allocation4], 0
    %s10 = scalar_lea.sflag [#allocation4], 1
    %11 = vsyncpa %s10, 0
    loop: start=0, step=1, limit=4
    $region2: #{tpu_custom_call.1} parent=1 // loop_pre_header
      _
    $region3: #{tpu_custom_call.1} parent=1 // loop_header
      %s13 = sphi 0, %s17
      %p14 = scmp.ge.s32.totalorder %s13, 4
      %s20 = sphi 0, %s32
      %s21 = sphi 0, %s28
      %s22 = sphi 0, %s20
      %s23 = sphi 0, %s21
      %s24 = sphi 0, %s22
      %s25 = sphi 0, %s23
      %s37 = sphi 0, %s39
      %s40 = sphi 0, %s37
      %s41 = sphi 0, %s40
      %s57 = sphi 0, %s41
      %s65 = sphi 0, %s67
      %s68 = sphi 0, %s65
      %s69 = sphi 0, %s68
      %s85 = sphi 0, %s69
      %s89 = sphi 0, %s89
      %s91 = sphi 0, %s89
      %s92 = sphi 0, %s91
      %s106 = sphi 0, %s92
      %s114 = sphi 0, %s116
      %s117 = sphi 0, %s114
      %s118 = sphi 0, %s117
      %s134 = sphi 0, %s118
    $region4: #{tpu_custom_call.1} parent=1 // loop_header_branch
      %16 = sbr.rel (%p14) target = $region8
    $region5: #{tpu_custom_call.1} parent=1 // loop_body
      %s18 = ssub.s32 %s13, 1
      %s19 = ssub.s32 %s13, 2
      %s26 = sadd.s32 1, %s21
      %p27 = scmp.ge.s32.totalorder %s26, 1
      %s28 = scalar_select %p27, 0, %s26
      %s29 = sadd.s32 1, %s20
      %s30 = scalar_select %p27, %s29, %s20
      %p31 = scmp.ge.s32.totalorder %s30, 2
      %s32 = scalar_select %p31, 0, %s30
      %s33 = ssub.s32 %s20, %s32
      %s34 = ssub.s32 %s21, %s28
      %s35 = sor.u32 %s33, %s34
      %p36 = scmp.eq.s32.totalorder %s35, 0
      %s38 = sadd.s32 %s37, 1
      %s39 = scalar_select %p36, %s37, %s38
      %p42 = pneg %p36
      %p43 = scmp.eq.s32.totalorder %s13, 1
      %p44 = por %p42, %p43
      %p45 = scmp.ne.s32.totalorder %s37, %s40
      %p46 = scmp.eq.s32.totalorder %s13, 0
      %p47 = por %p45, %p46
      %p48 = scmp.ne.s32.totalorder %s37, %s40
      %p49 = scmp.eq.s32.totalorder %s18, 1
      %p50 = por %p48, %p49
      %p51 = scmp.ne.s32.totalorder %s40, %s41
      %p52 = scmp.eq.s32.totalorder %s18, 0
      %p53 = por %p51, %p52
      %p54 = scmp.ne.s32.totalorder %s40, %s41
      %p55 = scmp.eq.s32.totalorder %s19, 1
      %p56 = por %p54, %p55
      %p58 = scmp.ne.s32.totalorder %s41, %s57
      %p59 = scmp.eq.s32.totalorder %s19, 0
      %p60 = por %p58, %p59
      %s61 = ssub.s32 %s20, %s32
      %s62 = ssub.s32 %s21, %s28
      %s63 = sor.u32 %s61, %s62
      %p64 = scmp.eq.s32.totalorder %s63, 0
      %s66 = sadd.s32 %s65, 1
      %s67 = scalar_select %p64, %s65, %s66
      %p70 = pneg %p64
      %p71 = scmp.eq.s32.totalorder %s13, 1
      %p72 = por %p70, %p71
      %p73 = scmp.ne.s32.totalorder %s65, %s68
      %p74 = scmp.eq.s32.totalorder %s13, 0
      %p75 = por %p73, %p74
      %p76 = scmp.ne.s32.totalorder %s65, %s68
      %p77 = scmp.eq.s32.totalorder %s18, 1
      %p78 = por %p76, %p77
      %p79 = scmp.ne.s32.totalorder %s68, %s69
      %p80 = scmp.eq.s32.totalorder %s18, 0
      %p81 = por %p79, %p80
      %p82 = scmp.ne.s32.totalorder %s68, %s69
      %p83 = scmp.eq.s32.totalorder %s19, 1
      %p84 = por %p82, %p83
      %p86 = scmp.ne.s32.totalorder %s69, %s85
      %p87 = scmp.eq.s32.totalorder %s19, 0
      %p88 = por %p86, %p87
      %s90 = sadd.s32 %s89, 1
      %p93 = scmp.eq.s32.totalorder %s13, 1
      %p94 = scmp.ne.s32.totalorder %s89, %s91
      %p95 = scmp.eq.s32.totalorder %s13, 0
      %p96 = por %p94, %p95
      %p97 = scmp.ne.s32.totalorder %s89, %s91
      %p98 = scmp.eq.s32.totalorder %s18, 1
      %p99 = por %p97, %p98
      %p100 = scmp.ne.s32.totalorder %s91, %s92
      %p101 = scmp.eq.s32.totalorder %s18, 0
      %p102 = por %p100, %p101
      %p103 = scmp.ne.s32.totalorder %s91, %s92
      %p104 = scmp.eq.s32.totalorder %s19, 1
      %p105 = por %p103, %p104
      %p107 = scmp.ne.s32.totalorder %s92, %s106
      %p108 = scmp.eq.s32.totalorder %s19, 0
      %p109 = por %p107, %p108
      %s110 = ssub.s32 %s20, %s32
      %s111 = ssub.s32 %s21, %s28
      %s112 = sor.u32 %s110, %s111
      %p113 = scmp.eq.s32.totalorder %s112, 0
      %s115 = sadd.s32 %s114, 1
      %s116 = scalar_select %p113, %s114, %s115
      %p119 = pneg %p113
      %p120 = scmp.eq.s32.totalorder %s13, 1
      %p121 = por %p119, %p120
      %p122 = scmp.ne.s32.totalorder %s114, %s117
      %p123 = scmp.eq.s32.totalorder %s13, 0
      %p124 = por %p122, %p123
      %p125 = scmp.ne.s32.totalorder %s114, %s117
      %p126 = scmp.eq.s32.totalorder %s18, 1
      %p127 = por %p125, %p126
      %p128 = scmp.ne.s32.totalorder %s117, %s118
      %p129 = scmp.eq.s32.totalorder %s18, 0
      %p130 = por %p128, %p129
      %p131 = scmp.ne.s32.totalorder %s117, %s118
      %p132 = scmp.eq.s32.totalorder %s19, 1
      %p133 = por %p131, %p132
      %p135 = scmp.ne.s32.totalorder %s118, %s134
      %p136 = scmp.eq.s32.totalorder %s19, 0
      %p137 = por %p135, %p136
      %p138 = scmp.le.s32.totalorder 1, %s13
      %p139 = scmp.lt.s32.totalorder %s13, 3
      %p140 = pnand %p138, %p139
      %p141 = pneg %p140
      // Predicated region
      $region9: #{tpu_custom_call.1} parent=5 // pred_check
        _
      $region10: #{tpu_custom_call.1} parent=5 // pred_check_branch
        %143 = sbr.rel (%p140) target = $region12
      $region11: #{tpu_custom_call.1} parent=5 // pred_region
        %s144 = ssub.s32 %s13, 1
        // Predicated region
        $region13: #{tpu_custom_call.1} parent=11 // pred_check
          %p145 = pneg %p102
        $region14: #{tpu_custom_call.1} parent=11 // pred_check_branch
          %147 = sbr.rel (%p145) target = $region16
        $region15: #{tpu_custom_call.1} parent=11 // pred_region
          %s149 = ssub.s32 128, 128
          %150 = vsyncadd [#allocation3], %s149
          %s152 = sshll.u32 [#allocation2], 4
          %s153 = int_to_ptr.vmem [resolvable:$true] %s152
          %155 = dma.hbm_to_vmem [thread:$0]  %s2, 128, %s153, [#allocation3]
        $region16: #{tpu_custom_call.1} parent=11 // pred_fallthru
          _
      $region12: #{tpu_custom_call.1} parent=5 // pred_fallthru
        _
      %p156 = scmp.lt.s32.totalorder %s13, 2
      // Predicated region
      $region17: #{tpu_custom_call.1} parent=5 // pred_check
        %p157 = pneg %p156
      $region18: #{tpu_custom_call.1} parent=5 // pred_check_branch
        %159 = sbr.rel (%p157) target = $region20
      $region19: #{tpu_custom_call.1} parent=5 // pred_region
        // Predicated region
        $region21: #{tpu_custom_call.1} parent=19 // pred_check
          %p160 = pneg %p47
        $region22: #{tpu_custom_call.1} parent=19 // pred_check_branch
          %162 = sbr.rel (%p160) target = $region24
        $region23: #{tpu_custom_call.1} parent=19 // pred_region
          %p163 = scmp.lt.s32.totalorder %s20, 1
          %s164 = scalar_select %p163, %s20, 1
          %p165 = scmp.lt.s32.totalorder %s21, 0
          %s166 = scalar_select %p165, %s21, 0
          %s167 = sadd.s32 %s166, %s164
          %s168 = smul.addr %s167, 8
          %s169 = scalar_lea.vmem %s0, %s168
        $region24: #{tpu_custom_call.1} parent=19 // pred_fallthru
          _
        // Predicated region
        $region25: #{tpu_custom_call.1} parent=19 // pred_check
          %p170 = pneg %p75
        $region26: #{tpu_custom_call.1} parent=19 // pred_check_branch
          %172 = sbr.rel (%p170) target = $region28
        $region27: #{tpu_custom_call.1} parent=19 // pred_region
          %p173 = scmp.lt.s32.totalorder %s20, 1
          %s174 = scalar_select %p173, %s20, 1
          %p175 = scmp.lt.s32.totalorder %s21, 0
          %s176 = scalar_select %p175, %s21, 0
          %s177 = sadd.s32 %s176, %s174
          %s178 = smul.addr %s177, 8
          %s179 = scalar_lea.vmem %s1, %s178
        $region28: #{tpu_custom_call.1} parent=19 // pred_fallthru
          _
      $region20: #{tpu_custom_call.1} parent=5 // pred_fallthru
        _
      %p180 = scmp.le.s32.totalorder 1, %s13
      %p181 = scmp.lt.s32.totalorder %s13, 3
      %p182 = pnand %p180, %p181
      %p183 = pneg %p182
      // Predicated region
      $region29: #{tpu_custom_call.1} parent=5 // pred_check
        _
      $region30: #{tpu_custom_call.1} parent=5 // pred_check_branch
        %185 = sbr.rel (%p182) target = $region32
      $region31: #{tpu_custom_call.1} parent=5 // pred_region
        %s186 = ssub.s32 %s13, 1
        // Predicated region
        $region33: #{tpu_custom_call.1} parent=31 // pred_check
          %p187 = pneg %p102
        $region34: #{tpu_custom_call.1} parent=31 // pred_check_branch
          %189 = sbr.rel (%p187) target = $region36
        $region35: #{tpu_custom_call.1} parent=31 // pred_region
          %190 = dma.done [#allocation3], 128
        $region36: #{tpu_custom_call.1} parent=31 // pred_fallthru
          _
        %p191 = scmp.lt.s32.totalorder %s22, 1
        %s192 = scalar_select %p191, %s22, 1
        %p193 = scmp.lt.s32.totalorder %s23, 0
        %s194 = scalar_select %p193, %s23, 0
        %s195 = sadd.s32 %s194, %s192
        %s196 = smul.addr %s195, 8
        %s197 = scalar_lea.vmem %s0, %s196
        %p198 = pneg %p53
        %p199 = pneg %p50
        %p200 = scmp.lt.s32.totalorder %s22, 1
        %s201 = scalar_select %p200, %s22, 1
        %p202 = scmp.lt.s32.totalorder %s23, 0
        %s203 = scalar_select %p202, %s23, 0
        %s204 = sadd.s32 %s203, %s201
        %s205 = smul.addr %s204, 8
        %s206 = scalar_lea.vmem %s1, %s205
        %p207 = pneg %p81
        %p208 = pneg %p78
        %p209 = pneg %p102
        %p210 = pneg %p99
        %p211 = pneg %p130
        %p212 = pneg %p127
        %s213 = sand.u32 %s117, 1
        %s214 = scalar_lea.sflag [#allocation4], %s213
        %s215 = sand.u32 %s117, 1
        %s216 = smul.addr %s215, 8
        %s217 = scalar_lea.vmem [#allocation5], %s216
        %p218 = scmp.lt.s32.totalorder %s22, 1
        %s219 = scalar_select %p218, %s22, 1
        %p220 = scmp.lt.s32.totalorder %s23, 0
        %s221 = scalar_select %p220, %s23, 0
        %s222 = sadd.s32 %s221, %s219
        %s223 = smul.addr %s222, 8
        %s224 = scalar_lea.vmem %s0, %s223
        %p225 = scmp.lt.s32.totalorder %s22, 1
        %s226 = scalar_select %p225, %s22, 1
        %p227 = scmp.lt.s32.totalorder %s23, 0
        %s228 = scalar_select %p227, %s23, 0
        %s229 = sadd.s32 %s228, %s226
        %s230 = smul.addr %s229, 8
        %s231 = scalar_lea.vmem %s1, %s230
        %v232 = vld [vmem:[%s224] sm:$0xff]
        %v233 = vld [vmem:[%s231] sm:$0xff]
        %v234 = vlaneseq
        %v235 = vshrl.u32 %v234, 7
        %s236 = smul.u32 %s23, 8
        %v237 = vstv %s236
        %v238 = vadd.s32 %v237, %v235
        %vm239 = vcmp.lt.s32.totalorder %v238, 8
        %v240 = vsel %vm239, 1, 0
        %vm241 = vcmp.eq.s32.totalorder %v240, 1
        %v242 = vsel %vm241, %v232, 0.0
        %v243 = vlaneseq
        %v244 = vand.u32 %v243, 127
        %245 = vset.pattern.permute.xlu0 0
        %246 = vperm.xlu0 %245, %v233
        %v247 = vpop.permute.xlu0 %246
        %vm248 = vcmp.eq.s32.totalorder %v244, %v247
        %vm249 = vcmask 261120
        %v250 = vsel %vm249, %v242, -inf
        %251 = vmax.xlane.f32.xlu0 %v250
        %v252 = vpop.xlane.xlu0 %251
        %v253 = vsub.f32 %v242, %v252
        %v254 = vmul.f32 %v253, 1.442695
        %v255 = vpow.pop %v254
        %v256 = vsel %vm249, %v255, 0.0
        %257 = vadd.xlane.f32.xlu0 %v256
        %v258 = vpop.xlane.xlu0 %257
        %v259 = vlog2.pop %v258
        %v260 = vmul.f32 %v259, 0.6931472
        %v261 = vadd.f32 %v252, %v260
        %v262 = vsel %vm248, %v242, 0.0
        %v263 = vsel %vm249, %v262, 0.0
        %264 = vadd.xlane.f32.xlu0 %v263
        %v265 = vpop.xlane.xlu0 %264
        %v266 = vsub.f32 %v261, %v265
        %vm267 = vcmp.eq.s32.totalorder %v233, 31
        %v268 = vsel %vm267, 0.1, 1.0
        %v269 = vsel %vm239, %v268, 0.0
        %v270 = vmul.f32 %v269, %v266
        %vm271 = vcmask 7168
        %v272 = vsel %vm271, %v270, 0.0
        %273 = vadd.xlane.f32.xlu0 %v272
        %v274 = vpop.xlane.xlu0 %273
        %v275 = vrot.slane %v274, 4
        %v276 = vadd.f32 %v274, %v275
        %v277 = vrot.slane %v276, 2
        %v278 = vadd.f32 %v276, %v277
        %v279 = vrot.slane %v278, 1
        %v280 = vadd.f32 %v278, %v279
        %s281 = vtos %v280
        %v282 = vsel %vm271, %v269, 0.0
        %283 = vadd.xlane.f32.xlu0 %v282
        %v284 = vpop.xlane.xlu0 %283
        %v285 = vrot.slane %v284, 4
        %v286 = vadd.f32 %v284, %v285
        %v287 = vrot.slane %v286, 2
        %v288 = vadd.f32 %v286, %v287
        %v289 = vrot.slane %v288, 1
        %v290 = vadd.f32 %v288, %v289
        %s291 = vtos %v290
        %vm292 = vcmp.lt.s32.totalorder %v238, 4
        %vm293 = vmand %vm239, %vm292
        %vm294 = vcmp.ge.f32.partialorder %v265, %v252
        %vm295 = vmand %vm293, %vm294
        %v296 = vsel %vm295, 1.0, 0.0
        %v297 = vsel %vm271, %v296, 0.0
        %298 = vadd.xlane.f32.xlu0 %v297
        %v299 = vpop.xlane.xlu0 %298
        %v300 = vrot.slane %v299, 4
        %v301 = vadd.f32 %v299, %v300
        %v302 = vrot.slane %v301, 2
        %v303 = vadd.f32 %v301, %v302
        %v304 = vrot.slane %v303, 1
        %v305 = vadd.f32 %v303, %v304
        %s306 = vtos %v305
        %vm307 = vcmp.ge.f32.partialorder %v242, %v252
        %vm308 = vmxor %vm307, 1
        %vm309 = vmand %vm239, %vm308
        %v310 = vsel %vm309, 1.0, 0.0
        %312 = vrot.lane.b32.xlu0 %v310, 97
        %v313 = vpop.permute.xlu0 %312
        %v315 = vsel %vm271, %v313, 0.0
        %316 = vadd.xlane.f32.xlu0 %v315
        %v317 = vpop.xlane.xlu0 %316
        %v318 = vrot.slane %v317, 4
        %v319 = vadd.f32 %v317, %v318
        %v320 = vrot.slane %v319, 2
        %v321 = vadd.f32 %v319, %v320
        %v322 = vrot.slane %v321, 1
        %v323 = vadd.f32 %v321, %v322
        %s324 = vtos %v323
        %v325 = vld [vmem:[#allocation2] sm:$0xff]
        %v327 = vrot.slane %v325, 4
        %v329 = vsub.f32 %v325, %v327
        %v330 = vand.u32 2147483647, %v329
        %vm331 = vcmask 1043456
        %v332 = vsel %vm331, %v330, 0.0
        %333 = vadd.xlane.f32.xlu0 %v332
        %v334 = vpop.xlane.xlu0 %333
        %v335 = vrot.slane %v334, 4
        %v336 = vadd.f32 %v334, %v335
        %v337 = vrot.slane %v336, 2
        %v338 = vadd.f32 %v336, %v337
        %v339 = vrot.slane %v338, 1
        %v340 = vadd.f32 %v338, %v339
        %s341 = vtos %v340
        %v342 = vmul.f32 %v325, 0.5
        %v344 = vrot.slane %v342, 2
        %v346 = vsub.f32 %v325, %v344
        %v347 = vadd.f32 %v325, %v344
        %v348 = vsub.f32 %v347, %v346
        %v350 = vrot.slane %v348, 1
        %v352 = vmul.f32 %v348, %v350
        %v354 = vrot.slane %v347, 4
        %v356 = vmin.f32 %v347, %v354
        %v358 = vrot.slane %v346, 4
        %v360 = vmax.f32 %v346, %v358
        %v361 = vsub.f32 %v356, %v360
        %v362 = vmax.f32 %v361, 0.0
        %v364 = vrot.slane %v362, 1
        %v366 = vmul.f32 %v362, %v364
        %v368 = vrot.slane %v352, 4
        %v370 = vadd.f32 %v352, %v368
        %v371 = vsub.f32 %v370, %v366
        %v372 = vrcp.pop %v371
        %v373 = vmul.f32 %v366, %v372
        %v374 = vmax.f32 %v347, %v354
        %v375 = vmin.f32 %v346, %v358
        %v376 = vsub.f32 %v374, %v375
        %v377 = vmax.f32 %v376, 0.0
        %v379 = vrot.slane %v377, 1
        %v381 = vmul.f32 %v377, %v379
        %v382 = vsub.f32 %v381, %v371
        %v383 = vrcp.pop %v381
        %v384 = vmul.f32 %v382, %v383
        %v385 = vsub.f32 %v373, %v384
        %v386 = vsub.f32 1.0, %v385
        %vm387 = vcmask 1040384
        %v388 = vsel %vm387, %v386, 0.0
        %389 = vadd.xlane.f32.xlu0 %v388
        %v390 = vpop.xlane.xlu0 %389
        %v391 = vrot.slane %v390, 4
        %v392 = vadd.f32 %v390, %v391
        %v393 = vrot.slane %v392, 2
        %v394 = vadd.f32 %v392, %v393
        %v395 = vrot.slane %v394, 1
        %v396 = vadd.f32 %v394, %v395
        %s397 = vtos %v396
        %vm398 = vcmp.eq.s32.totalorder %v244, 0
        %v399 = vstv %s281
        %v400 = vsel %vm398, %v399, 0.0
        %vm401 = vcmp.eq.s32.totalorder %v244, 1
        %v402 = vstv %s291
        %v403 = vsel %vm401, %v402, %v400
        %vm404 = vcmp.eq.s32.totalorder %v244, 2
        %v405 = vstv %s306
        %v406 = vsel %vm404, %v405, %v403
        %vm407 = vcmp.eq.s32.totalorder %v244, 3
        %v408 = vstv %s324
        %v409 = vsel %vm407, %v408, %v406
        %vm410 = vcmp.eq.s32.totalorder %v244, 4
        %v411 = vstv %s341
        %v412 = vsel %vm410, %v411, %v409
        %vm413 = vcmp.eq.s32.totalorder %v244, 5
        %v414 = vstv %s397
        %v415 = vsel %vm413, %v414, %v412
        %416 = vst [vmem:[%s217] sm:$0xff] %v415
        %s417 = sand.u32 %s117, 1
        %s418 = scalar_lea.sflag [#allocation4], %s417
        %s419 = sand.u32 %s117, 1
        %s420 = smul.addr %s419, 8
        %s421 = scalar_lea.vmem [#allocation5], %s420
        // Predicated region
        $region37: #{tpu_custom_call.1} parent=31 // pred_check
          %p422 = pneg %p127
        $region38: #{tpu_custom_call.1} parent=31 // pred_check_branch
          %424 = sbr.rel (%p422) target = $region40
        $region39: #{tpu_custom_call.1} parent=31 // pred_region
          %s426 = ssub.s32 128, 128
          %427 = vsyncadd %s418, %s426
          %s428 = sadd.s32 %s23, %s22
          %s429 = smul.addr %s428, 128
          %s430 = scalar_lea.hbm %s3, %s429
          %s432 = sshll.u32 %s421, 4
          %s433 = int_to_ptr.vmem [resolvable:$true] %s432
          %435 = dma.vmem_to_hbm [thread:$0]  %s433, 128, %s430, %s418
        $region40: #{tpu_custom_call.1} parent=31 // pred_fallthru
          _
      $region32: #{tpu_custom_call.1} parent=5 // pred_fallthru
        _
      %p436 = scmp.le.s32.totalorder 2, %s13
      // Predicated region
      $region41: #{tpu_custom_call.1} parent=5 // pred_check
        %p437 = pneg %p436
      $region42: #{tpu_custom_call.1} parent=5 // pred_check_branch
        %439 = sbr.rel (%p437) target = $region44
      $region43: #{tpu_custom_call.1} parent=5 // pred_region
        %s440 = ssub.s32 %s13, 2
        // Predicated region
        $region45: #{tpu_custom_call.1} parent=43 // pred_check
          %p441 = pneg %p133
        $region46: #{tpu_custom_call.1} parent=43 // pred_check_branch
          %443 = sbr.rel (%p441) target = $region48
        $region47: #{tpu_custom_call.1} parent=43 // pred_region
          %s444 = sand.u32 %s118, 1
          %s445 = scalar_lea.sflag [#allocation4], %s444
          %s446 = sand.u32 %s118, 1
          %s447 = smul.addr %s446, 8
          %s448 = scalar_lea.vmem [#allocation5], %s447
          %449 = dma.done %s445, 128
        $region48: #{tpu_custom_call.1} parent=43 // pred_fallthru
          _
      $region44: #{tpu_custom_call.1} parent=5 // pred_fallthru
        _
    $region6: #{tpu_custom_call.1} parent=1 // loop_footer
      %s17 = sadd.s32 1, %s13
    $region7: #{tpu_custom_call.1} parent=1 // loop_footer_branch
      %12 = sbr.rel target = $region3
    $region8: #{tpu_custom_call.1} parent=1 // loop_exit
      _
    %450 = vsyncpa [#allocation3], 1
    %s451 = scalar_lea.sflag [#allocation3], 1
    %452 = vsyncpa %s451, 1
    %453 = vsyncpa [#allocation4], 1
    %s454 = scalar_lea.sflag [#allocation4], 1
    %455 = vsyncpa %s454, 1

</llo_original>
